<compile_context>
chip_gen: v7x
topology: tpu7x:2x2x1
jax: 0.10.0
libtpu: 0.0.40
codegen_flags: <defaults>
</compile_context>

<pallas_src>
import functools

import jax
import jax.numpy as jnp
from jax.experimental import pallas as pl
from jax.experimental.pallas import tpu as pltpu


def _round_up(v, m):
    return (v + m - 1) // m * m


def _fused_gcn_kernel(x_ref, adj_ref, w_ref, b_ref, emb_ref, logp_ref, h_ref, *,
                      nclass):
    """One grid step == one GCN layer. adj/x stay resident; h carried in VMEM scratch."""
    layer = pl.program_id(0)
    last = pl.num_programs(0) - 1

    @pl.when(layer == 0)
    def _init():
        h_ref[...] = x_ref[...]                       # h0 = x  (bf16)
        logp_ref[...] = jnp.zeros_like(logp_ref)

    # support = h @ W_l            (Np, FP) @ (FP, FP), f32 accumulation on the MXU
    support = jnp.dot(h_ref[...], w_ref[...], preferred_element_type=jnp.float32)
    # embed  = adj @ support + b   (Np, Np) @ (Np, FP), f32 accumulation
    embed = jnp.dot(adj_ref[...], support.astype(jnp.bfloat16),
                    preferred_element_type=jnp.float32) + b_ref[...]
    emb_ref[...] = embed                              # module output embed_{l+1}
    # relu for the next layer (harmless on the last layer; dropout = identity in eval)
    h_ref[...] = jnp.maximum(embed, 0.0).astype(jnp.bfloat16)

    @pl.when(layer == last)
    def _log_softmax():
        # mask padded class columns so they don't contribute to max / sum
        col = jax.lax.broadcasted_iota(jnp.int32, embed.shape, 1)
        valid = col < nclass
        m = jnp.max(jnp.where(valid, embed, -jnp.inf), axis=1, keepdims=True)
        e = jnp.where(valid, jnp.exp(embed - m), 0.0)
        lse = jnp.log(jnp.sum(e, axis=1, keepdims=True))
        logp_ref[...] = embed - m - lse               # padded cols garbage; sliced off


@jax.jit
def gcn_pia8_forward(x, adj, params):
    n, nfeat = x.shape
    nhid = params[0][0].shape[1]
    nclass = params[-1][0].shape[1]
    n_layers = len(params)

    fp = _round_up(max(nfeat, nhid, nclass), 128)     # common lane-dense feature width
    n_pad = _round_up(n, 8)

    # zero-pad + stack per-layer weights/biases so the layer index can be a grid axis
    w_stack = jnp.stack([
        jnp.pad(w, ((0, fp - w.shape[0]), (0, fp - w.shape[1]))).astype(jnp.bfloat16)
        for (w, _) in params])                        # (L, FP, FP) bf16
    b_stack = jnp.stack([
        jnp.pad(b, ((0, 0), (0, fp - b.shape[1]))).astype(jnp.float32)
        for (_, b) in params])                        # (L, 1, FP)  f32

    x_p = jnp.pad(x, ((0, n_pad - n), (0, fp - nfeat))).astype(jnp.bfloat16)
    adj_p = jnp.pad(adj, ((0, n_pad - n), (0, n_pad - n))).astype(jnp.bfloat16)

    kernel = functools.partial(_fused_gcn_kernel, nclass=nclass)

    embeds_p, logp_p = pl.pallas_call(
        kernel,
        out_shape=(
            jax.ShapeDtypeStruct((n_layers, n_pad, fp), jnp.float32),   # embeds 1..9
            jax.ShapeDtypeStruct((n_pad, fp), jnp.float32),             # log_softmax
        ),
        grid_spec=pltpu.PrefetchScalarGridSpec(
            num_scalar_prefetch=0,
            grid=(n_layers,),
            in_specs=[
                pl.BlockSpec((n_pad, fp), lambda l: (0, 0)),         # x    (fetched once)
                pl.BlockSpec((n_pad, n_pad), lambda l: (0, 0)),      # adj  (resident)
                pl.BlockSpec((None, fp, fp), lambda l: (l, 0, 0)),   # W_l  (pipelined)
                pl.BlockSpec((None, 1, fp), lambda l: (l, 0, 0)),    # b_l
            ],
            out_specs=(
                pl.BlockSpec((None, n_pad, fp), lambda l: (l, 0, 0)),  # embed_l
                pl.BlockSpec((n_pad, fp), lambda l: (0, 0)),           # logp (resident)
            ),
            scratch_shapes=[pltpu.VMEM((n_pad, fp), jnp.bfloat16)],    # h across layers
        ),
        compiler_params=pltpu.CompilerParams(
            dimension_semantics=("arbitrary",)),       # layer axis is sequential
    )(x_p, adj_p, w_stack, b_stack)

    logp = logp_p[:n, :nclass]
    embeds = [embeds_p[i, :n, :nhid] for i in range(n_layers - 1)]
    embeds.append(embeds_p[n_layers - 1, :n, :nclass])
    return (logp, *embeds)


def init_params(key, nfeat, nhid, nclass):
    """Param init mimicking GraphConvolution.reset_parameters
    (uniform in [-1/sqrt(F_out), 1/sqrt(F_out)])."""
    dims = [(nfeat, nhid)] + [(nhid, nhid)] * 7 + [(nhid, nclass)]
    params = []
    for (fi, fo) in dims:
        key, kw, kb = jax.random.split(key, 3)
        stdv = 1.0 / jnp.sqrt(jnp.float32(fo))
        w = jax.random.uniform(kw, (fi, fo), jnp.float32, -stdv, stdv)
        b = jax.random.uniform(kb, (1, fo), jnp.float32, -stdv, stdv)
        params.append((w, b))
    return params


def reference_forward(x, adj, params):
    """Pure-JAX reference using the same bf16-storage / f32-accumulate recipe."""
    h = x.astype(jnp.bfloat16)
    adj_b = adj.astype(jnp.bfloat16)
    embeds = []
    for (w, b) in params:
        support = jnp.dot(h, w.astype(jnp.bfloat16),
                          preferred_element_type=jnp.float32)
        out = jnp.dot(adj_b, support.astype(jnp.bfloat16),
                      preferred_element_type=jnp.float32) + b
        embeds.append(out)
        h = jnp.maximum(out, 0.0).astype(jnp.bfloat16)
    logp = jax.nn.log_softmax(embeds[-1], axis=1)
    return (logp, *embeds)


if __name__ == "__main__":
    N, NFEAT, NHID, NCLASS = 16, 16, 32, 8

    key = jax.random.PRNGKey(0)
    key, kx, kadj, kp = jax.random.split(key, 4)

    x = jax.random.normal(kx, (N, NFEAT), jnp.float32)

    # Symmetric, row-normalized dense adjacency with self-loops.
    a = (jax.random.uniform(kadj, (N, N)) > 0.7).astype(jnp.float32)
    a = jnp.maximum(a, a.T) + jnp.eye(N, dtype=jnp.float32)
    adj = a / jnp.sum(a, axis=1, keepdims=True)

    params = init_params(kp, NFEAT, NHID, NCLASS)

    outs = jax.block_until_ready(gcn_pia8_forward(x, adj, params))

    # Shape checks.
    assert outs[0].shape == (N, NCLASS)
    assert outs[1].shape == (N, NHID)
    assert outs[8].shape == (N, NHID)
    assert outs[9].shape == (N, NCLASS)
    # log_softmax rows normalize to 1.
    assert jnp.allclose(jnp.sum(jnp.exp(outs[0]), axis=1), 1.0, atol=1e-4)
    # Match the pure-JAX reference (same bf16 storage / f32 accumulation).
    refs = reference_forward(x, adj, params)
    for got, want in zip(outs, refs):
        err = float(jnp.max(jnp.abs(got - want)))
        assert jnp.allclose(got, want, atol=2e-3, rtol=2e-3), err

    print("KERNEL_OK")
</pallas_src>

<mosaic_0001>
module attributes {stable_mosaic.version = 11 : i64} {
  func.func @_fused_gcn_kernel(%arg0: i32, %arg1: memref<16x128xbf16, #tpu.memory_space<vmem>>, %arg2: memref<16x16xbf16, #tpu.memory_space<vmem>>, %arg3: memref<1x128x128xbf16, #tpu.memory_space<vmem>>, %arg4: memref<1x1x128xf32, #tpu.memory_space<vmem>>, %arg5: memref<1x16x128xf32, #tpu.memory_space<vmem>>, %arg6: memref<16x128xf32, #tpu.memory_space<vmem>>, %arg7: memref<16x128xbf16, #tpu.memory_space<vmem>>) attributes {dimension_semantics = [#tpu.dimension_semantics<arbitrary>], iteration_bounds = array<i64: 9>, scalar_prefetch = 0 : i64, scratch_operands = 1 : i64, tpu.core_type = #tpu.core_type<tc>, window_params = [{pipeline_mode = #tpu.pipeline_mode<synchronous>, transform_indices = @transform_0, window_bounds = array<i64: 16, 128>}, {pipeline_mode = #tpu.pipeline_mode<synchronous>, transform_indices = @transform_1, window_bounds = array<i64: 16, 16>}, {transform_indices = @transform_2, window_bounds = array<i64: 1, 128, 128>}, {transform_indices = @transform_3, window_bounds = array<i64: 1, 1, 128>}, {transform_indices = @transform_4, window_bounds = array<i64: 1, 16, 128>}, {pipeline_mode = #tpu.pipeline_mode<synchronous>, transform_indices = @transform_5, window_bounds = array<i64: 16, 128>}]} {
    %c0_i32 = arith.constant 0 : i32
    %0 = arith.cmpi eq, %arg0, %c0_i32 : i32
    %1 = arith.extui %0 : i1 to i32
    %c0_i32_0 = arith.constant 0 : i32
    %2 = arith.cmpi ne, %1, %c0_i32_0 : i32
    scf.if %2 {
      %c0_18 = arith.constant 0 : index
      %c0_19 = arith.constant 0 : index
      %24 = vector.load %arg1[%c0_18, %c0_19] : memref<16x128xbf16, #tpu.memory_space<vmem>>, vector<16x128xbf16>
      %c0_20 = arith.constant 0 : index
      %c0_21 = arith.constant 0 : index
      %25 = vector.load %arg7[%c0_20, %c0_21] : memref<16x128xbf16, #tpu.memory_space<vmem>>, vector<16x128xbf16>
      tpu.vector_store %arg7[%c0_20, %c0_21], %24 {strides = array<i32>} : memref<16x128xbf16, #tpu.memory_space<vmem>>, vector<16x128xbf16>,
      %cst_22 = arith.constant 0.000000e+00 : f32
      %26 = vector.broadcast %cst_22 : f32 to vector<16x128xf32>
      %c0_23 = arith.constant 0 : index
      %c0_24 = arith.constant 0 : index
      %27 = vector.load %arg6[%c0_23, %c0_24] : memref<16x128xf32, #tpu.memory_space<vmem>>, vector<16x128xf32>
      tpu.vector_store %arg6[%c0_23, %c0_24], %26 {strides = array<i32>} : memref<16x128xf32, #tpu.memory_space<vmem>>, vector<16x128xf32>,
    } else {
    }
    %c0 = arith.constant 0 : index
    %c0_1 = arith.constant 0 : index
    %3 = vector.load %arg7[%c0, %c0_1] : memref<16x128xbf16, #tpu.memory_space<vmem>>, vector<16x128xbf16>
    %c0_2 = arith.constant 0 : index
    %c0_3 = arith.constant 0 : index
    %c0_4 = arith.constant 0 : index
    %4 = vector.load %arg3[%c0_2, %c0_3, %c0_4] : memref<1x128x128xbf16, #tpu.memory_space<vmem>>, vector<1x128x128xbf16>
    %5 = vector.shape_cast %4 : vector<1x128x128xbf16> to vector<128x128xbf16>
    %cst = arith.constant dense<0.000000e+00> : vector<16x128xf32>
    %6 = tpu.matmul %3, %5, %cst {dimension_numbers = #tpu.dot_dimension_numbers<[1], [0], [0], [1], [0, 0, 1, 1], [], []>} : vector<16x128xbf16>, vector<128x128xbf16>, vector<16x128xf32> -> vector<16x128xf32>
    %c0_5 = arith.constant 0 : index
    %c0_6 = arith.constant 0 : index
    %7 = vector.load %arg2[%c0_5, %c0_6] : memref<16x16xbf16, #tpu.memory_space<vmem>>, vector<16x16xbf16>
    %8 = arith.truncf %6 : vector<16x128xf32> to vector<16x128xbf16>
    %cst_7 = arith.constant dense<0.000000e+00> : vector<16x128xf32>
    %9 = tpu.matmul %7, %8, %cst_7 {dimension_numbers = #tpu.dot_dimension_numbers<[1], [0], [0], [1], [0, 0, 1, 1], [], []>} : vector<16x16xbf16>, vector<16x128xbf16>, vector<16x128xf32> -> vector<16x128xf32>
    %c0_8 = arith.constant 0 : index
    %c0_9 = arith.constant 0 : index
    %c0_10 = arith.constant 0 : index
    %10 = vector.load %arg4[%c0_8, %c0_9, %c0_10] : memref<1x1x128xf32, #tpu.memory_space<vmem>>, vector<1x1x128xf32>
    %11 = vector.shape_cast %10 : vector<1x1x128xf32> to vector<1x128xf32>
    %12 = vector.broadcast %11 : vector<1x128xf32> to vector<16x128xf32>
    %13 = arith.addf %9, %12 : vector<16x128xf32>
    %c0_11 = arith.constant 0 : index
    %c0_12 = arith.constant 0 : index
    %c0_13 = arith.constant 0 : index
    %14 = vector.load %arg5[%c0_11, %c0_12, %c0_13] : memref<1x16x128xf32, #tpu.memory_space<vmem>>, vector<1x16x128xf32>
    %15 = vector.shape_cast %14 : vector<1x16x128xf32> to vector<16x128xf32>
    %16 = vector.shape_cast %13 : vector<16x128xf32> to vector<1x16x128xf32>
    tpu.vector_store %arg5[%c0_11, %c0_12, %c0_13], %16 {strides = array<i32>} : memref<1x16x128xf32, #tpu.memory_space<vmem>>, vector<1x16x128xf32>,
    %cst_14 = arith.constant 0.000000e+00 : f32
    %17 = vector.broadcast %cst_14 : f32 to vector<16x128xf32>
    %18 = arith.maximumf %13, %17 : vector<16x128xf32>
    %19 = arith.truncf %18 : vector<16x128xf32> to vector<16x128xbf16>
    %c0_15 = arith.constant 0 : index
    %c0_16 = arith.constant 0 : index
    %20 = vector.load %arg7[%c0_15, %c0_16] : memref<16x128xbf16, #tpu.memory_space<vmem>>, vector<16x128xbf16>
    tpu.vector_store %arg7[%c0_15, %c0_16], %19 {strides = array<i32>} : memref<16x128xbf16, #tpu.memory_space<vmem>>, vector<16x128xbf16>,
    %c8_i32 = arith.constant 8 : i32
    %21 = arith.cmpi eq, %arg0, %c8_i32 : i32
    %22 = arith.extui %21 : i1 to i32
    %c0_i32_17 = arith.constant 0 : i32
    %23 = arith.cmpi ne, %22, %c0_i32_17 : i32
    scf.if %23 {
      %24 = tpu.iota {dimensions = array<i32: 1>} : vector<16x128xi32>
      %c8_i32_18 = arith.constant 8 : i32
      %25 = vector.broadcast %c8_i32_18 : i32 to vector<16x128xi32>
      %26 = arith.cmpi slt, %24, %25 : vector<16x128xi32>
      %cst_19 = arith.constant 0xFF800000 : f32
      %27 = vector.broadcast %cst_19 : f32 to vector<16x128xf32>
      %28 = arith.select %26, %13, %27 : vector<16x128xi1>, vector<16x128xf32>
      %cst_20 = arith.constant dense<0xFF800000> : vector<16xf32>
      %29 = vector.multi_reduction <maximumf>, %28, %cst_20 [1] : vector<16x128xf32> to vector<16xf32>
      %30 = vector.shape_cast %29 : vector<16xf32> to vector<16x1xf32>
      %31 = vector.broadcast %30 : vector<16x1xf32> to vector<16x128xf32>
      %32 = arith.subf %13, %31 : vector<16x128xf32>
      %33 = math.exp %32 : vector<16x128xf32>
      %cst_21 = arith.constant 0.000000e+00 : f32
      %34 = vector.broadcast %cst_21 : f32 to vector<16x128xf32>
      %35 = arith.select %26, %33, %34 : vector<16x128xi1>, vector<16x128xf32>
      %cst_22 = arith.constant dense<0.000000e+00> : vector<16xf32>
      %36 = vector.multi_reduction <add>, %35, %cst_22 [1] : vector<16x128xf32> to vector<16xf32>
      %37 = vector.shape_cast %36 : vector<16xf32> to vector<16x1xf32>
      %38 = math.log %37 : vector<16x1xf32>
      %39 = vector.broadcast %30 : vector<16x1xf32> to vector<16x128xf32>
      %40 = arith.subf %13, %39 : vector<16x128xf32>
      %41 = vector.broadcast %38 : vector<16x1xf32> to vector<16x128xf32>
      %42 = arith.subf %40, %41 : vector<16x128xf32>
      %c0_23 = arith.constant 0 : index
      %c0_24 = arith.constant 0 : index
      %43 = vector.load %arg6[%c0_23, %c0_24] : memref<16x128xf32, #tpu.memory_space<vmem>>, vector<16x128xf32>
      tpu.vector_store %arg6[%c0_23, %c0_24], %42 {strides = array<i32>} : memref<16x128xf32, #tpu.memory_space<vmem>>, vector<16x128xf32>,
    } else {
    }
    return
  }
  func.func @transform_0(%arg0: i32) -> (i32, i32) {
    %c0_i32 = arith.constant 0 : i32
    %c0_i32_0 = arith.constant 0 : i32
    %c0_i32_1 = arith.constant 0 : i32
    return %c0_i32, %c0_i32_0 : i32, i32
  }
  func.func @transform_1(%arg0: i32) -> (i32, i32) {
    %c0_i32 = arith.constant 0 : i32
    %c0_i32_0 = arith.constant 0 : i32
    %c0_i32_1 = arith.constant 0 : i32
    return %c0_i32, %c0_i32_0 : i32, i32
  }
  func.func @transform_2(%arg0: i32) -> (i32, i32, i32) {
    %c0_i32 = arith.constant 0 : i32
    %c0_i32_0 = arith.constant 0 : i32
    %c0_i32_1 = arith.constant 0 : i32
    return %arg0, %c0_i32, %c0_i32_0 : i32, i32, i32
  }
  func.func @transform_3(%arg0: i32) -> (i32, i32, i32) {
    %c0_i32 = arith.constant 0 : i32
    %c0_i32_0 = arith.constant 0 : i32
    %c0_i32_1 = arith.constant 0 : i32
    return %arg0, %c0_i32, %c0_i32_0 : i32, i32, i32
  }
  func.func @transform_4(%arg0: i32) -> (i32, i32, i32) {
    %c0_i32 = arith.constant 0 : i32
    %c0_i32_0 = arith.constant 0 : i32
    %c0_i32_1 = arith.constant 0 : i32
    return %arg0, %c0_i32, %c0_i32_0 : i32, i32, i32
  }
  func.func @transform_5(%arg0: i32) -> (i32, i32) {
    %c0_i32 = arith.constant 0 : i32
    %c0_i32_0 = arith.constant 0 : i32
    %c0_i32_1 = arith.constant 0 : i32
    return %c0_i32, %c0_i32_0 : i32, i32
  }
}

</mosaic_0001>

<llo_original>
// kernel: gcn_pia8_forward.1
$region0: #{gcn_pia8_forward.1}
  #allocation0 [shape = 'u32[]', space=smem, size = 0x4, offset = 0x4, fixed_abs, tag = 'smem constant byte address 0x4 - core index']
  #allocation1 [shape = 'u32[144,128]{1,0:T(1,128)}', space=vmem, size = 0x12000, scoped, tag = 'internal scratch']
  #allocation2 [shape = 'bf16[16,128]{1,0:T(16,128)(2,1)}', space=vmem, size = 0x1000, scoped, tag = 'scratch operand']
  %s0 = inlined_call_operand.vmem [shape: bf16[16,128], index: 0, kind: input, shape index: {}]
  %s1 = inlined_call_operand.vmem [shape: bf16[16,16], index: 1, kind: input, shape index: {}]
  %s2 = inlined_call_operand.vmem [shape: bf16[9,128,128], index: 2, kind: input, shape index: {}]
  %s3 = inlined_call_operand.vmem [shape: f32[9,1,128], index: 3, kind: input, shape index: {}]
  %s4 = inlined_call_operand.vmem [shape: f32[9,16,128], index: 4, kind: output, shape index: {0}]
  %s5 = inlined_call_operand.vmem [shape: f32[16,128], index: 5, kind: output, shape index: {1}]
  %6 = xla_tuple %s4, %s5
  %s7 = sld [smem:[#allocation0]]
  $region65: #{gcn_pia8_forward.1} parent=0
    _
  %s9 = ssub.s32 1, %s7
  %s10 = scalar_select 0, %s9, %s7
  loop: start=0, step=1, limit=11
  $region2: #{gcn_pia8_forward.1} parent=0 // loop_pre_header
    _
  $region3: #{gcn_pia8_forward.1} parent=0 // loop_header
    %s12 = sphi 0, %s16
    %p13 = scmp.ge.s32.totalorder %s12, 11
    %s20 = sphi 0, %s20
    %s22 = sphi 0, %s20
    %s23 = sphi 0, %s22
    %s37 = sphi 0, %s23
    %s41 = sphi 0, %s41
    %s43 = sphi 0, %s41
    %s44 = sphi 0, %s43
    %s58 = sphi 0, %s44
    %s64 = sphi 0, %s66
    %s67 = sphi 0, %s64
    %s68 = sphi 0, %s67
    %s84 = sphi 0, %s68
    %s90 = sphi 0, %s92
    %s93 = sphi 0, %s90
    %s94 = sphi 0, %s93
    %s110 = sphi 0, %s94
    %s116 = sphi 0, %s118
    %s119 = sphi 0, %s116
    %s120 = sphi 0, %s119
    %s136 = sphi 0, %s120
    %s140 = sphi 0, %s140
    %s142 = sphi 0, %s140
    %s143 = sphi 0, %s142
    %s157 = sphi 0, %s143
  $region4: #{gcn_pia8_forward.1} parent=0 // loop_header_branch
    %15 = sbr.rel (%p13) target = $region8
  $region5: #{gcn_pia8_forward.1} parent=0 // loop_body
    %s17 = ssub.s32 %s12, 1
    %s18 = ssub.s32 %s12, 2
    %s19 = sadd.s32 %s12, 1
    %s21 = sadd.s32 %s20, 1
    %p24 = scmp.eq.s32.totalorder %s12, 8
    %p25 = scmp.ne.s32.totalorder %s20, %s22
    %p26 = scmp.eq.s32.totalorder %s12, 0
    %p27 = por %p25, %p26
    %p28 = scmp.ne.s32.totalorder %s20, %s22
    %p29 = scmp.eq.s32.totalorder %s17, 8
    %p30 = por %p28, %p29
    %p31 = scmp.ne.s32.totalorder %s22, %s23
    %p32 = scmp.eq.s32.totalorder %s17, 0
    %p33 = por %p31, %p32
    %p34 = scmp.ne.s32.totalorder %s22, %s23
    %p35 = scmp.eq.s32.totalorder %s18, 8
    %p36 = por %p34, %p35
    %p38 = scmp.ne.s32.totalorder %s23, %s37
    %p39 = scmp.eq.s32.totalorder %s18, 0
    %p40 = por %p38, %p39
    %s42 = sadd.s32 %s41, 1
    %p45 = scmp.eq.s32.totalorder %s12, 8
    %p46 = scmp.ne.s32.totalorder %s41, %s43
    %p47 = scmp.eq.s32.totalorder %s12, 0
    %p48 = por %p46, %p47
    %p49 = scmp.ne.s32.totalorder %s41, %s43
    %p50 = scmp.eq.s32.totalorder %s17, 8
    %p51 = por %p49, %p50
    %p52 = scmp.ne.s32.totalorder %s43, %s44
    %p53 = scmp.eq.s32.totalorder %s17, 0
    %p54 = por %p52, %p53
    %p55 = scmp.ne.s32.totalorder %s43, %s44
    %p56 = scmp.eq.s32.totalorder %s18, 8
    %p57 = por %p55, %p56
    %p59 = scmp.ne.s32.totalorder %s44, %s58
    %p60 = scmp.eq.s32.totalorder %s18, 0
    %p61 = por %p59, %p60
    %s62 = ssub.s32 %s12, %s19
    %p63 = scmp.eq.s32.totalorder %s62, 0
    %s65 = sadd.s32 %s64, 1
    %s66 = scalar_select %p63, %s64, %s65
    %p69 = pneg %p63
    %p70 = scmp.eq.s32.totalorder %s12, 8
    %p71 = por %p69, %p70
    %p72 = scmp.ne.s32.totalorder %s64, %s67
    %p73 = scmp.eq.s32.totalorder %s12, 0
    %p74 = por %p72, %p73
    %p75 = scmp.ne.s32.totalorder %s64, %s67
    %p76 = scmp.eq.s32.totalorder %s17, 8
    %p77 = por %p75, %p76
    %p78 = scmp.ne.s32.totalorder %s67, %s68
    %p79 = scmp.eq.s32.totalorder %s17, 0
    %p80 = por %p78, %p79
    %p81 = scmp.ne.s32.totalorder %s67, %s68
    %p82 = scmp.eq.s32.totalorder %s18, 8
    %p83 = por %p81, %p82
    %p85 = scmp.ne.s32.totalorder %s68, %s84
    %p86 = scmp.eq.s32.totalorder %s18, 0
    %p87 = por %p85, %p86
    %s88 = ssub.s32 %s12, %s19
    %p89 = scmp.eq.s32.totalorder %s88, 0
    %s91 = sadd.s32 %s90, 1
    %s92 = scalar_select %p89, %s90, %s91
    %p95 = pneg %p89
    %p96 = scmp.eq.s32.totalorder %s12, 8
    %p97 = por %p95, %p96
    %p98 = scmp.ne.s32.totalorder %s90, %s93
    %p99 = scmp.eq.s32.totalorder %s12, 0
    %p100 = por %p98, %p99
    %p101 = scmp.ne.s32.totalorder %s90, %s93
    %p102 = scmp.eq.s32.totalorder %s17, 8
    %p103 = por %p101, %p102
    %p104 = scmp.ne.s32.totalorder %s93, %s94
    %p105 = scmp.eq.s32.totalorder %s17, 0
    %p106 = por %p104, %p105
    %p107 = scmp.ne.s32.totalorder %s93, %s94
    %p108 = scmp.eq.s32.totalorder %s18, 8
    %p109 = por %p107, %p108
    %p111 = scmp.ne.s32.totalorder %s94, %s110
    %p112 = scmp.eq.s32.totalorder %s18, 0
    %p113 = por %p111, %p112
    %s114 = ssub.s32 %s12, %s19
    %p115 = scmp.eq.s32.totalorder %s114, 0
    %s117 = sadd.s32 %s116, 1
    %s118 = scalar_select %p115, %s116, %s117
    %p121 = pneg %p115
    %p122 = scmp.eq.s32.totalorder %s12, 8
    %p123 = por %p121, %p122
    %p124 = scmp.ne.s32.totalorder %s116, %s119
    %p125 = scmp.eq.s32.totalorder %s12, 0
    %p126 = por %p124, %p125
    %p127 = scmp.ne.s32.totalorder %s116, %s119
    %p128 = scmp.eq.s32.totalorder %s17, 8
    %p129 = por %p127, %p128
    %p130 = scmp.ne.s32.totalorder %s119, %s120
    %p131 = scmp.eq.s32.totalorder %s17, 0
    %p132 = por %p130, %p131
    %p133 = scmp.ne.s32.totalorder %s119, %s120
    %p134 = scmp.eq.s32.totalorder %s18, 8
    %p135 = por %p133, %p134
    %p137 = scmp.ne.s32.totalorder %s120, %s136
    %p138 = scmp.eq.s32.totalorder %s18, 0
    %p139 = por %p137, %p138
    %s141 = sadd.s32 %s140, 1
    %p144 = scmp.eq.s32.totalorder %s12, 8
    %p145 = scmp.ne.s32.totalorder %s140, %s142
    %p146 = scmp.eq.s32.totalorder %s12, 0
    %p147 = por %p145, %p146
    %p148 = scmp.ne.s32.totalorder %s140, %s142
    %p149 = scmp.eq.s32.totalorder %s17, 8
    %p150 = por %p148, %p149
    %p151 = scmp.ne.s32.totalorder %s142, %s143
    %p152 = scmp.eq.s32.totalorder %s17, 0
    %p153 = por %p151, %p152
    %p154 = scmp.ne.s32.totalorder %s142, %s143
    %p155 = scmp.eq.s32.totalorder %s18, 8
    %p156 = por %p154, %p155
    %p158 = scmp.ne.s32.totalorder %s143, %s157
    %p159 = scmp.eq.s32.totalorder %s18, 0
    %p160 = por %p158, %p159
    %p161 = scmp.le.s32.totalorder 1, %s12
    %p162 = scmp.lt.s32.totalorder %s12, 10
    %p163 = pnand %p161, %p162
    %p164 = pneg %p163
    // Predicated region
    $region9: #{gcn_pia8_forward.1} parent=5 // pred_check
      _
    $region10: #{gcn_pia8_forward.1} parent=5 // pred_check_branch
      %166 = sbr.rel (%p163) target = $region12
    $region11: #{gcn_pia8_forward.1} parent=5 // pred_region
      %s167 = ssub.s32 %s12, 1
      // Predicated region
      $region13: #{gcn_pia8_forward.1} parent=11 // pred_check
        %p168 = pneg %p33
      $region14: #{gcn_pia8_forward.1} parent=11 // pred_check_branch
        %170 = sbr.rel (%p168) target = $region16
      $region15: #{gcn_pia8_forward.1} parent=11 // pred_region
        _
      $region16: #{gcn_pia8_forward.1} parent=11 // pred_fallthru
        _
      // Predicated region
      $region17: #{gcn_pia8_forward.1} parent=11 // pred_check
        %p171 = pneg %p54
      $region18: #{gcn_pia8_forward.1} parent=11 // pred_check_branch
        %173 = sbr.rel (%p171) target = $region20
      $region19: #{gcn_pia8_forward.1} parent=11 // pred_region
        _
      $region20: #{gcn_pia8_forward.1} parent=11 // pred_fallthru
        _
    $region12: #{gcn_pia8_forward.1} parent=5 // pred_fallthru
      _
    %p174 = scmp.lt.s32.totalorder %s12, 9
    // Predicated region
    $region21: #{gcn_pia8_forward.1} parent=5 // pred_check
      %p175 = pneg %p174
    $region22: #{gcn_pia8_forward.1} parent=5 // pred_check_branch
      %177 = sbr.rel (%p175) target = $region24
    $region23: #{gcn_pia8_forward.1} parent=5 // pred_region
      // Predicated region
      $region25: #{gcn_pia8_forward.1} parent=23 // pred_check
        %p178 = pneg %p74
      $region26: #{gcn_pia8_forward.1} parent=23 // pred_check_branch
        %180 = sbr.rel (%p178) target = $region28
      $region27: #{gcn_pia8_forward.1} parent=23 // pred_region
        %p181 = scmp.lt.s32.totalorder %s12, 8
        %s182 = scalar_select %p181, %s12, 8
        %s183 = smul.addr %s182, 16
        %s184 = smul.addr %s183, 4
        %s185 = scalar_lea.vmem %s2, %s184
      $region28: #{gcn_pia8_forward.1} parent=23 // pred_fallthru
        _
      // Predicated region
      $region29: #{gcn_pia8_forward.1} parent=23 // pred_check
        %p186 = pneg %p100
      $region30: #{gcn_pia8_forward.1} parent=23 // pred_check_branch
        %188 = sbr.rel (%p186) target = $region32
      $region31: #{gcn_pia8_forward.1} parent=23 // pred_region
        %p189 = scmp.lt.s32.totalorder %s12, 8
        %s190 = scalar_select %p189, %s12, 8
        %s191 = scalar_lea.vmem %s3, %s190
      $region32: #{gcn_pia8_forward.1} parent=23 // pred_fallthru
        _
    $region24: #{gcn_pia8_forward.1} parent=5 // pred_fallthru
      _
    %p192 = scmp.le.s32.totalorder 1, %s12
    %p193 = scmp.lt.s32.totalorder %s12, 10
    %p194 = pnand %p192, %p193
    %p195 = pneg %p194
    // Predicated region
    $region33: #{gcn_pia8_forward.1} parent=5 // pred_check
      _
    $region34: #{gcn_pia8_forward.1} parent=5 // pred_check_branch
      %197 = sbr.rel (%p194) target = $region36
    $region35: #{gcn_pia8_forward.1} parent=5 // pred_region
      %s198 = ssub.s32 %s12, 1
      %p199 = pneg %p33
      %p200 = pneg %p30
      %p201 = pneg %p54
      %p202 = pneg %p51
      %p203 = scmp.lt.s32.totalorder %s17, 8
      %s204 = scalar_select %p203, %s17, 8
      %s205 = smul.addr %s204, 16
      %s206 = smul.addr %s205, 4
      %s207 = scalar_lea.vmem %s2, %s206
      %p208 = pneg %p80
      %p209 = pneg %p77
      %p210 = scmp.lt.s32.totalorder %s17, 8
      %s211 = scalar_select %p210, %s17, 8
      %s212 = scalar_lea.vmem %s3, %s211
      %p213 = pneg %p106
      %p214 = pneg %p103
      %p215 = pneg %p132
      %p216 = pneg %p129
      %p217 = scmp.lt.s32.totalorder %s17, 8
      %s218 = scalar_select %p217, %s17, 8
      %s219 = smul.addr %s218, 2
      %s220 = smul.addr %s219, 8
      %s221 = scalar_lea.vmem %s4, %s220
      %p222 = pneg %p153
      %p223 = pneg %p150
      %p224 = scmp.lt.s32.totalorder %s17, 8
      %s225 = scalar_select %p224, %s17, 8
      %s226 = smul.addr %s225, 16
      %s227 = smul.addr %s226, 4
      %s228 = scalar_lea.vmem %s2, %s227
      %p229 = scmp.lt.s32.totalorder %s17, 8
      %s230 = scalar_select %p229, %s17, 8
      %s231 = scalar_lea.vmem %s3, %s230
      %p232 = scmp.lt.s32.totalorder %s17, 8
      %s233 = scalar_select %p232, %s17, 8
      %s234 = smul.addr %s233, 2
      %s235 = smul.addr %s234, 8
      %s236 = scalar_lea.vmem %s4, %s235
      %p238 = scmp.eq.s32.totalorder %s17, 0
      // Predicated region
      $region37: #{gcn_pia8_forward.1} parent=35 // pred_check
        %p239 = pneg %p238
      $region38: #{gcn_pia8_forward.1} parent=35 // pred_check_branch
        %241 = sbr.rel (%p239) target = $region40
      $region39: #{gcn_pia8_forward.1} parent=35 // pred_region
        %v242 = vld [vmem:[%s0] sm:$0xf]
        %v243 = vld [vmem:[%s0 + $0x4] sm:$0xf]
        %v246 = vunpack.c.l.b16 %v242
        %v247 = vunpack.c.l.b16 %v243
        %v248 = vpack.c.b16 %v247, %v246
        %250 = vst [vmem:[#allocation2] sm:$0xff] %v248
        %251 = vst [vmem:[%s5] sm:$0xff] 0.0
        %252 = vst [vmem:[%s5 + $0x8] sm:$0xff] 0.0
      $region40: #{gcn_pia8_forward.1} parent=35 // pred_fallthru
        _
      %v253 = vld [vmem:[#allocation2] sm:$0xff]
      %v254 = vld [vmem:[%s228] sm:$0xf]
      %v255 = vld [vmem:[%s228 + $0x4] sm:$0xf]
      %v256 = vld [vmem:[%s228 + $0x8] sm:$0xf]
      %v257 = vld [vmem:[%s228 + $0xc] sm:$0xf]
      %v258 = vld [vmem:[%s228 + $0x10] sm:$0xf]
      %v259 = vld [vmem:[%s228 + $0x14] sm:$0xf]
      %v260 = vld [vmem:[%s228 + $0x18] sm:$0xf]
      %v261 = vld [vmem:[%s228 + $0x1c] sm:$0xf]
      %v262 = vld [vmem:[%s228 + $0x20] sm:$0xf]
      %v263 = vld [vmem:[%s228 + $0x24] sm:$0xf]
      %v264 = vld [vmem:[%s228 + $0x28] sm:$0xf]
      %v265 = vld [vmem:[%s228 + $0x2c] sm:$0xf]
      %v266 = vld [vmem:[%s228 + $0x30] sm:$0xf]
      %v267 = vld [vmem:[%s228 + $0x34] sm:$0xf]
      %v268 = vld [vmem:[%s228 + $0x38] sm:$0xf]
      %v269 = vld [vmem:[%s228 + $0x3c] sm:$0xf]
      %v286 = vunpack.c.l.b16 %v254
      %v287 = vunpack.c.l.b16 %v255
      %v288 = vunpack.c.l.b16 %v256
      %v289 = vunpack.c.l.b16 %v257
      %v290 = vunpack.c.l.b16 %v258
      %v291 = vunpack.c.l.b16 %v259
      %v292 = vunpack.c.l.b16 %v260
      %v293 = vunpack.c.l.b16 %v261
      %v294 = vunpack.c.l.b16 %v262
      %v295 = vunpack.c.l.b16 %v263
      %v296 = vunpack.c.l.b16 %v264
      %v297 = vunpack.c.l.b16 %v265
      %v298 = vunpack.c.l.b16 %v266
      %v299 = vunpack.c.l.b16 %v267
      %v300 = vunpack.c.l.b16 %v268
      %v301 = vunpack.c.l.b16 %v269
      %v302 = vpack.c.b16 %v287, %v286
      %v303 = vpack.c.b16 %v289, %v288
      %v304 = vpack.c.b16 %v291, %v290
      %v305 = vpack.c.b16 %v293, %v292
      %v306 = vpack.c.b16 %v295, %v294
      %v307 = vpack.c.b16 %v297, %v296
      %v308 = vpack.c.b16 %v299, %v298
      %v309 = vpack.c.b16 %v301, %v300
      %318 = vmatprep.subr.bf16.mxu0 0
      %319 = vmatpush1.bf16.msra.mxu0 %v302
      %320 = vmatprep.subr.bf16.mxu0 0
      %321 = vmatpush1.bf16.msra.mxu0 %v303
      %322 = vmatprep.subr.bf16.mxu0 0
      %323 = vmatpush1.bf16.msra.mxu0 %v304
      %324 = vmatprep.subr.bf16.mxu0 0
      %325 = vmatpush1.bf16.msra.mxu0 %v305
      %326 = vmatprep.subr.bf16.mxu0 0
      %327 = vmatpush1.bf16.msra.mxu0 %v306
      %328 = vmatprep.subr.bf16.mxu0 0
      %329 = vmatpush1.bf16.msra.mxu0 %v307
      %330 = vmatprep.subr.bf16.mxu0 0
      %331 = vmatpush1.bf16.msra.mxu0 %v308
      %332 = vmatprep.subr.bf16.mxu0 0
      %333 = vmatpush1.bf16.msra.mxu0 %v309
      %334 = vmatprep.subr.bf16.mxu0 0
      %335 = vmatpush1.bf16.msra.mxu0 0
      %336 = vmatprep.subr.bf16.mxu0 0
      %337 = vmatpush1.bf16.msra.mxu0 0
      %338 = vmatprep.subr.bf16.mxu0 0
      %339 = vmatpush1.bf16.msra.mxu0 0
      %340 = vmatprep.subr.bf16.mxu0 0
      %341 = vmatpush1.bf16.msra.mxu0 0
      %342 = vmatprep.subr.bf16.mxu0 0
      %343 = vmatpush1.bf16.msra.mxu0 0
      %344 = vmatprep.subr.bf16.mxu0 0
      %345 = vmatpush1.bf16.msra.mxu0 0
      %346 = vmatprep.subr.bf16.mxu0 0
      %347 = vmatpush1.bf16.msra.mxu0 0
      %348 = vmatprep.subr.bf16.mxu0 0
      %349 = vmatpush1.bf16.msra.mxu0 0
      %350 = vmatprep.mubr.bf16.mxu0 0
      %351 = vmatmul.mubr.bf16.gmra.mrb[0].mxu0 %v253
      %v352 = vpop.f32.mrb[0].mxu0
      %v353 = vadd.f32 0.0, %v352
      %v354 = vpop.f32.mrb[0].mxu0
      %v355 = vpop.f32.mrb[0].mxu0
      %v356 = vadd.f32 0.0, %v355
      %v357 = vpop.f32.mrb[0].mxu0
      %358 = vdwg.mxu0
      %v359 = vld [vmem:[%s1] sm:$0xf]
      %v360 = vld [vmem:[%s1 + $0x4] sm:$0xf]
      %v361 = vpack.c.bf16 %v356, %v353
      %v362 = vld [vmem:[%s231] sm:$0x1]
      %v364 = vlaneseq
      %v365 = vshrl.u32 %v364, 7
      %v366 = vsub.s32 0, %v365
      %v367 = vrot.slane %v362, %v366
      %v371 = vunpack.c.l.b16 %v359
      %v372 = vunpack.c.l.b16 %v360
      %v373 = vpack.c.b16 %v372, %v371
      %vm374 = vcmask 130048
      %v376 = vsel %vm374, %v373, 0
      %378 = vmatprep.subr.bf16.mxu0 0
      %379 = vmatpush1.bf16.msra.mxu0 %v361
      %380 = vmatprep.subr.bf16.mxu0 0
      %381 = vmatpush1.bf16.msra.mxu0 0
      %382 = vmatprep.subr.bf16.mxu0 0
      %383 = vmatpush1.bf16.msra.mxu0 0
      %384 = vmatprep.subr.bf16.mxu0 0
      %385 = vmatpush1.bf16.msra.mxu0 0
      %386 = vmatprep.subr.bf16.mxu0 0
      %387 = vmatpush1.bf16.msra.mxu0 0
      %388 = vmatprep.subr.bf16.mxu0 0
      %389 = vmatpush1.bf16.msra.mxu0 0
      %390 = vmatprep.subr.bf16.mxu0 0
      %391 = vmatpush1.bf16.msra.mxu0 0
      %392 = vmatprep.subr.bf16.mxu0 0
      %393 = vmatpush1.bf16.msra.mxu0 0
      %394 = vmatprep.subr.bf16.mxu0 0
      %395 = vmatpush1.bf16.msra.mxu0 0
      %396 = vmatprep.subr.bf16.mxu0 0
      %397 = vmatpush1.bf16.msra.mxu0 0
      %398 = vmatprep.subr.bf16.mxu0 0
      %399 = vmatpush1.bf16.msra.mxu0 0
      %400 = vmatprep.subr.bf16.mxu0 0
      %401 = vmatpush1.bf16.msra.mxu0 0
      %402 = vmatprep.subr.bf16.mxu0 0
      %403 = vmatpush1.bf16.msra.mxu0 0
      %404 = vmatprep.subr.bf16.mxu0 0
      %405 = vmatpush1.bf16.msra.mxu0 0
      %406 = vmatprep.subr.bf16.mxu0 0
      %407 = vmatpush1.bf16.msra.mxu0 0
      %408 = vmatprep.subr.bf16.mxu0 0
      %409 = vmatpush1.bf16.msra.mxu0 0
      %410 = vmatprep.mubr.bf16.mxu0 0
      %411 = vmatmul.mubr.bf16.gmra.mrb[0].mxu0 %v376
      %v412 = vpop.f32.mrb[0].mxu0
      %v413 = vadd.f32 %v367, %v412
      %v414 = vpop.f32.mrb[0].mxu0
      %v415 = vpop.f32.mrb[0].mxu0
      %v416 = vadd.f32 %v367, %v415
      %v417 = vpop.f32.mrb[0].mxu0
      %418 = vdwg.mxu0
      %419 = vst [vmem:[%s236] sm:$0xff] %v413
      %420 = vst [vmem:[%s236 + $0x8] sm:$0xff] %v416
      %v421 = vmax.f32 %v413, 0.0
      %v422 = vmax.f32 %v416, 0.0
      %v423 = vpack.c.bf16 %v422, %v421
      %424 = vst [vmem:[#allocation2] sm:$0xff] %v423
      %p425 = scmp.eq.s32.totalorder %s17, 8
      // Predicated region
      $region41: #{gcn_pia8_forward.1} parent=35 // pred_check
        %p426 = pneg %p425
      $region42: #{gcn_pia8_forward.1} parent=35 // pred_check_branch
        %428 = sbr.rel (%p426) target = $region44
      $region43: #{gcn_pia8_forward.1} parent=35 // pred_region
        %v429 = vlaneseq
        %v430 = vand.u32 %v429, 127
        %vm431 = vcmp.lt.s32.totalorder %v430, 8
        %v432 = vsel %vm431, %v413, -inf
        %v433 = vsel %vm431, %v416, -inf
        %434 = vmax.xlane.f32.xlu0 %v432
        %v435 = vpop.xlane.xlu0 %434
        %436 = vmax.xlane.f32.xlu0 %v433
        %v437 = vpop.xlane.xlu0 %436
        %v438 = vsub.f32 %v413, %v435
        %v439 = vsub.f32 %v416, %v437
        %v440 = vmul.f32 %v438, 1.442695
        %v441 = vpow.pop %v440
        %v442 = vmul.f32 %v439, 1.442695
        %v443 = vpow.pop %v442
        %v444 = vsel %vm431, %v441, 0.0
        %v445 = vsel %vm431, %v443, 0.0
        %446 = vadd.xlane.f32.xlu0 %v444
        %v447 = vpop.xlane.xlu0 %446
        %448 = vadd.xlane.f32.xlu0 %v445
        %v449 = vpop.xlane.xlu0 %448
        %v450 = vlog2.pop %v447
        %v451 = vmul.f32 %v450, 0.6931472
        %v452 = vlog2.pop %v449
        %v453 = vmul.f32 %v452, 0.6931472
        %v454 = vsub.f32 %v438, %v451
        %v455 = vsub.f32 %v439, %v453
        %456 = vst [vmem:[%s5] sm:$0xff] %v454
        %457 = vst [vmem:[%s5 + $0x8] sm:$0xff] %v455
      $region44: #{gcn_pia8_forward.1} parent=35 // pred_fallthru
        _
      %p458 = scmp.lt.s32.totalorder %s17, 8
      %s459 = scalar_select %p458, %s17, 8
      %s460 = smul.addr %s459, 2
      %s461 = smul.addr %s460, 8
      %s462 = scalar_lea.vmem %s4, %s461
      // Predicated region
      $region45: #{gcn_pia8_forward.1} parent=35 // pred_check
        %p463 = pneg %p129
      $region46: #{gcn_pia8_forward.1} parent=35 // pred_check_branch
        %465 = sbr.rel (%p463) target = $region48
      $region47: #{gcn_pia8_forward.1} parent=35 // pred_region
        _
      $region48: #{gcn_pia8_forward.1} parent=35 // pred_fallthru
        _
      // Predicated region
      $region49: #{gcn_pia8_forward.1} parent=35 // pred_check
        %p466 = pneg %p150
      $region50: #{gcn_pia8_forward.1} parent=35 // pred_check_branch
        %468 = sbr.rel (%p466) target = $region52
      $region51: #{gcn_pia8_forward.1} parent=35 // pred_region
        _
      $region52: #{gcn_pia8_forward.1} parent=35 // pred_fallthru
        _
      // Predicated region
      $region53: #{gcn_pia8_forward.1} parent=35 // pred_check
        %p469 = pneg %p150
      $region54: #{gcn_pia8_forward.1} parent=35 // pred_check_branch
        %471 = sbr.rel (%p469) target = $region56
      $region55: #{gcn_pia8_forward.1} parent=35 // pred_region
        _
      $region56: #{gcn_pia8_forward.1} parent=35 // pred_fallthru
        _
    $region36: #{gcn_pia8_forward.1} parent=5 // pred_fallthru
      _
    %p472 = scmp.le.s32.totalorder 2, %s12
    // Predicated region
    $region57: #{gcn_pia8_forward.1} parent=5 // pred_check
      %p473 = pneg %p472
    $region58: #{gcn_pia8_forward.1} parent=5 // pred_check_branch
      %475 = sbr.rel (%p473) target = $region60
    $region59: #{gcn_pia8_forward.1} parent=5 // pred_region
      %s476 = ssub.s32 %s12, 2
      // Predicated region
      $region61: #{gcn_pia8_forward.1} parent=59 // pred_check
        %p477 = pneg %p135
      $region62: #{gcn_pia8_forward.1} parent=59 // pred_check_branch
        %479 = sbr.rel (%p477) target = $region64
      $region63: #{gcn_pia8_forward.1} parent=59 // pred_region
        %p480 = scmp.lt.s32.totalorder %s18, 8
        %s481 = scalar_select %p480, %s18, 8
        %s482 = smul.addr %s481, 2
        %s483 = smul.addr %s482, 8
        %s484 = scalar_lea.vmem %s4, %s483
      $region64: #{gcn_pia8_forward.1} parent=59 // pred_fallthru
        _
    $region60: #{gcn_pia8_forward.1} parent=5 // pred_fallthru
      _
  $region6: #{gcn_pia8_forward.1} parent=0 // loop_footer
    %s16 = sadd.s32 1, %s12
  $region7: #{gcn_pia8_forward.1} parent=0 // loop_footer_branch
    %11 = sbr.rel target = $region3
  $region8: #{gcn_pia8_forward.1} parent=0 // loop_exit
    _

</llo_original>
